<compile_context>
chip_gen: v6e
topology: v6e:2x2x1
jax: 0.10.0
libtpu: 0.0.40
codegen_flags: <defaults>
</compile_context>

<pallas_src>
import functools

import jax
import jax.numpy as jnp
import numpy as np
from jax.experimental import pallas as pl
from jax.experimental.pallas import tpu as pltpu


def _expand_mask_kernel(x_ref, o_ref, *, stride, padding):
    """Fused zero-insertion upsample + all-ones conv + threshold.

    x_ref: (bn, H, W)    compact mask block (int8 {0,1} or float32)
    o_ref: (bn, Hs, Ws)  int8 {0,1}, Hs = H*stride, Ws = W*stride
    """
    bn, H, W = x_ref.shape
    _, Hs, Ws = o_ref.shape
    s, p = stride, padding

    # 0/1 expansion matrices built in-register once per grid step (zero HBM
    # traffic), shared by all bn samples of the step.
    bb = jax.lax.broadcasted_iota(jnp.int32, (W, Ws), 0)
    jj = jax.lax.broadcasted_iota(jnp.int32, (W, Ws), 1)
    e_w = (jnp.abs(jj - bb * s) <= p).astype(jnp.float32)          # (W, Ws)

    ii = jax.lax.broadcasted_iota(jnp.int32, (Hs, H), 0)
    aa = jax.lax.broadcasted_iota(jnp.int32, (Hs, H), 1)
    e_h = (jnp.abs(ii - aa * s) <= p).astype(jnp.float32)          # (Hs, H)

    # Static unroll over the (small) batch tile: two 2D MXU matmuls per sample.
    for n in range(bn):
        x = x_ref[n].astype(jnp.float32)                               # (H, W)
        t = jnp.dot(x, e_w, preferred_element_type=jnp.float32)       # (H, Ws)
        acc = jnp.dot(e_h, t, preferred_element_type=jnp.float32)     # (Hs, Ws)
        o_ref[n] = (acc > 0.5).astype(jnp.int8)


def _pick_block_n(N, per_sample_bytes, vmem_budget=8 << 20, max_unroll=8):
    """Largest divisor of N within the VMEM budget that keeps >= 2 grid steps."""
    cap = int(max(1, min(max_unroll, vmem_budget // max(per_sample_bytes, 1))))
    best = 1
    for bn in range(1, min(N, cap) + 1):
        if N % bn == 0 and (N // bn >= 2 or N == 1):
            best = bn
    return best


def expand_mask(x, stride, padding=1):
    """x: (N, 1, H, W) mask (bool / int / float, NCHW like PyTorch). Returns bool."""
    assert x.shape[1] == 1
    N, _, H, W = x.shape
    Hs, Ws = H * stride, W * stride

    if jnp.issubdtype(x.dtype, jnp.floating):
        # Soft masks: keep exact sum-vs-0.5 semantics of the float conv.
        xin = x[:, 0].astype(jnp.float32)
        in_itemsize = 4
    else:
        # Binary masks (the normal dynconv case): 1-byte HBM stream.
        xin = x[:, 0].astype(jnp.int8)
        in_itemsize = 1

    # Per-sample footprint: double-buffered in/out blocks + f32 working set.
    per_sample = (2 * H * W * in_itemsize
                  + 2 * Hs * Ws
                  + 4 * (H * Ws + 2 * Hs * Ws))
    bn = _pick_block_n(N, per_sample)

    kernel = functools.partial(_expand_mask_kernel, stride=stride, padding=padding)
    out_i8 = pl.pallas_call(
        kernel,
        out_shape=jax.ShapeDtypeStruct((N, Hs, Ws), jnp.int8),
        grid=(N // bn,),
        in_specs=[pl.BlockSpec((bn, H, W), lambda i: (i, 0, 0))],
        out_specs=pl.BlockSpec((bn, Hs, Ws), lambda i: (i, 0, 0)),
        compiler_params=pltpu.CompilerParams(dimension_semantics=("parallel",)),
    )(xin)

    # glue: kernel emits int8 {0,1}; i1 VMEM outputs are not portable across
    # Mosaic versions, so the final bool cast stays in XLA (a 1-byte pass).
    return out_i8.astype(jnp.bool_)[:, None]  # (N, 1, Hs, Ws) bool


def _reference_expand_mask(x_np, stride, padding):
    """Pure numpy reference mirroring the PyTorch module."""
    N, _, H, W = x_np.shape
    xf = x_np.astype(np.float32)[:, 0]
    if stride > 1:
        up = np.zeros((N, H * stride, W * stride), np.float32)
        up[:, ::stride, ::stride] = xf
        xf = up
    Hs, Ws = xf.shape[1], xf.shape[2]
    p = padding
    padded = np.pad(xf, ((0, 0), (p, p), (p, p)))
    acc = np.zeros((N, Hs, Ws), np.float32)
    for di in range(2 * p + 1):
        for dj in range(2 * p + 1):
            acc += padded[:, di:di + Hs, dj:dj + Ws]
    return (acc > 0.5)[:, None]


if __name__ == "__main__":
    key = jax.random.PRNGKey(0)
    N, C, H, W = 2, 1, 16, 16

    # deterministic sparse binary mask input, NCHW with C == 1
    x = (jax.random.uniform(key, (N, C, H, W)) > 0.8)

    # main case: stride=2, padding=1
    stride, padding = 2, 1
    out = expand_mask(x, stride=stride, padding=padding)
    out = jax.block_until_ready(out)
    ref = _reference_expand_mask(np.asarray(x), stride, padding)
    assert out.shape == (N, 1, H * stride, W * stride), out.shape
    assert out.dtype == jnp.bool_, out.dtype
    np.testing.assert_array_equal(np.asarray(out), ref)

    # stride=1 path (no upsample)
    out1 = jax.block_until_ready(expand_mask(x, stride=1, padding=1))
    ref1 = _reference_expand_mask(np.asarray(x), 1, 1)
    np.testing.assert_array_equal(np.asarray(out1), ref1)

    # larger batch exercises the bn>1 (batch-tiled) path: N=4 -> bn=2, 2 steps
    key2 = jax.random.PRNGKey(1)
    x4 = (jax.random.uniform(key2, (4, 1, 16, 16)) > 0.7)
    out4 = jax.block_until_ready(expand_mask(x4, stride=2, padding=2))
    ref4 = _reference_expand_mask(np.asarray(x4), 2, 2)
    np.testing.assert_array_equal(np.asarray(out4), ref4)

    print("KERNEL_OK")
</pallas_src>

<mosaic_0001>
module attributes {stable_mosaic.version = 11 : i64} {
  func.func @_expand_mask_kernel(%arg0: i32, %arg1: memref<1x16x16xi8, #tpu.memory_space<vmem>>, %arg2: memref<1x32x32xi8, #tpu.memory_space<vmem>>) attributes {dimension_semantics = [#tpu.dimension_semantics<parallel>], iteration_bounds = array<i64: 2>, scalar_prefetch = 0 : i64, scratch_operands = 0 : i64, tpu.core_type = #tpu.core_type<tc>, window_params = [{transform_indices = @transform_0, window_bounds = array<i64: 1, 16, 16>}, {transform_indices = @transform_1, window_bounds = array<i64: 1, 32, 32>}]} {
    %0 = tpu.iota {dimensions = array<i32: 0>} : vector<16x32xi32>
    %1 = tpu.iota {dimensions = array<i32: 1>} : vector<16x32xi32>
    %c2_i32 = arith.constant 2 : i32
    %2 = vector.broadcast %c2_i32 : i32 to vector<16x32xi32>
    %3 = arith.muli %0, %2 : vector<16x32xi32>
    %4 = arith.subi %1, %3 : vector<16x32xi32>
    %5 = math.absi %4 : vector<16x32xi32>
    %c1_i32 = arith.constant 1 : i32
    %6 = vector.broadcast %c1_i32 : i32 to vector<16x32xi32>
    %7 = arith.cmpi sle, %5, %6 : vector<16x32xi32>
    %8 = arith.extui %7 : vector<16x32xi1> to vector<16x32xi32>
    %9 = arith.sitofp %8 : vector<16x32xi32> to vector<16x32xf32>
    %10 = tpu.iota {dimensions = array<i32: 0>} : vector<32x16xi32>
    %11 = tpu.iota {dimensions = array<i32: 1>} : vector<32x16xi32>
    %c2_i32_0 = arith.constant 2 : i32
    %12 = vector.broadcast %c2_i32_0 : i32 to vector<32x16xi32>
    %13 = arith.muli %11, %12 : vector<32x16xi32>
    %14 = arith.subi %10, %13 : vector<32x16xi32>
    %15 = math.absi %14 : vector<32x16xi32>
    %c1_i32_1 = arith.constant 1 : i32
    %16 = vector.broadcast %c1_i32_1 : i32 to vector<32x16xi32>
    %17 = arith.cmpi sle, %15, %16 : vector<32x16xi32>
    %18 = arith.extui %17 : vector<32x16xi1> to vector<32x16xi32>
    %19 = arith.sitofp %18 : vector<32x16xi32> to vector<32x16xf32>
    %c0 = arith.constant 0 : index
    %c0_2 = arith.constant 0 : index
    %c0_3 = arith.constant 0 : index
    %20 = vector.load %arg1[%c0, %c0_2, %c0_3] : memref<1x16x16xi8, #tpu.memory_space<vmem>>, vector<1x16x16xi8>
    %21 = vector.shape_cast %20 : vector<1x16x16xi8> to vector<16x16xi8>
    %22 = arith.sitofp %21 : vector<16x16xi8> to vector<16x16xf32>
    %cst = arith.constant dense<0.000000e+00> : vector<16x32xf32>
    %23 = tpu.matmul %22, %9, %cst {dimension_numbers = #tpu.dot_dimension_numbers<[1], [0], [0], [1], [0, 0, 1, 1], [], []>} : vector<16x16xf32>, vector<16x32xf32>, vector<16x32xf32> -> vector<16x32xf32>
    %cst_4 = arith.constant dense<0.000000e+00> : vector<32x32xf32>
    %24 = tpu.matmul %19, %23, %cst_4 {dimension_numbers = #tpu.dot_dimension_numbers<[1], [0], [0], [1], [0, 0, 1, 1], [], []>} : vector<32x16xf32>, vector<16x32xf32>, vector<32x32xf32> -> vector<32x32xf32>
    %cst_5 = arith.constant 5.000000e-01 : f32
    %25 = vector.broadcast %cst_5 : f32 to vector<32x32xf32>
    %26 = arith.cmpf ogt, %24, %25 : vector<32x32xf32>
    %27 = arith.extui %26 : vector<32x32xi1> to vector<32x32xi8>
    %c0_6 = arith.constant 0 : index
    %c0_7 = arith.constant 0 : index
    %c0_8 = arith.constant 0 : index
    %28 = vector.load %arg2[%c0_6, %c0_7, %c0_8] : memref<1x32x32xi8, #tpu.memory_space<vmem>>, vector<1x32x32xi8>
    %29 = vector.shape_cast %28 : vector<1x32x32xi8> to vector<32x32xi8>
    %30 = vector.shape_cast %27 : vector<32x32xi8> to vector<1x32x32xi8>
    tpu.vector_store %arg2[%c0_6, %c0_7, %c0_8], %30 {strides = array<i32>} : memref<1x32x32xi8, #tpu.memory_space<vmem>>, vector<1x32x32xi8>,
    return
  }
  func.func @transform_0(%arg0: i32) -> (i32, i32, i32) {
    %c0_i32 = arith.constant 0 : i32
    %c0_i32_0 = arith.constant 0 : i32
    %c0_i32_1 = arith.constant 0 : i32
    return %arg0, %c0_i32, %c0_i32_0 : i32, i32, i32
  }
  func.func @transform_1(%arg0: i32) -> (i32, i32, i32) {
    %c0_i32 = arith.constant 0 : i32
    %c0_i32_0 = arith.constant 0 : i32
    %c0_i32_1 = arith.constant 0 : i32
    return %arg0, %c0_i32, %c0_i32_0 : i32, i32, i32
  }
}

</mosaic_0001>

<llo_original>
// kernel: tpu_custom_call.1
$region0: #{tpu_custom_call.1}
  #allocation0 [shape = 'u32[]', space=smem, size = 0x4, offset = 0x4, fixed_abs, tag = 'smem constant byte address 0x4 - core index']
  #allocation1 [shape = 'u32[144,128]{1,0:T(1,128)}', space=vmem, size = 0x12000, scoped, tag = 'internal scratch']
  %s0 = inlined_call_operand.hbm [shape: s8[2,16,16], index: 0, kind: input, shape index: {}]
  %s1 = inlined_call_operand.hbm [shape: s8[2,32,32], index: 1, kind: output, shape index: {}]
  %s2 = sld [smem:[#allocation0]]
  $region41: #{tpu_custom_call.1} parent=0
    _
  %s4 = ssub.s32 1, %s2
  %s5 = scalar_select 0, %s4, %s2
  $region1: #{tpu_custom_call.1} parent=0
    #allocation2 [shape = 'u8[4096]{0}', space=vmem, size = 0x1000, scoped, tag = 'input window, operand 0']
    #allocation3 [shape = 's32[2]{0}', space=sflag, size = 0x8, scoped, tag = 'scoped memory for tpu_custom_call.1']
    #allocation4 [shape = 's32[2]{0}', space=sflag, size = 0x8, scoped, tag = 'scoped memory for tpu_custom_call.1']
    #allocation5 [shape = 'u8[8192]{0}', space=vmem, size = 0x2000, scoped, tag = 'output window, operand 0']
    %6 = vsyncpa [#allocation3], 0
    %s7 = scalar_lea.sflag [#allocation3], 1
    %8 = vsyncpa %s7, 0
    %9 = vsyncpa [#allocation4], 0
    %s10 = scalar_lea.sflag [#allocation4], 1
    %11 = vsyncpa %s10, 0
    loop: start=0, step=1, limit=4
    $region2: #{tpu_custom_call.1} parent=1 // loop_pre_header
      _
    $region3: #{tpu_custom_call.1} parent=1 // loop_header
      %s13 = sphi 0, %s17
      %p14 = scmp.ge.s32.totalorder %s13, 4
      %s23 = sphi 0, %s25
      %s26 = sphi 0, %s23
      %s27 = sphi 0, %s26
      %s43 = sphi 0, %s27
      %s49 = sphi 0, %s51
      %s52 = sphi 0, %s49
      %s53 = sphi 0, %s52
      %s69 = sphi 0, %s53
    $region4: #{tpu_custom_call.1} parent=1 // loop_header_branch
      %16 = sbr.rel (%p14) target = $region8
    $region5: #{tpu_custom_call.1} parent=1 // loop_body
      %s18 = ssub.s32 %s13, 1
      %s19 = ssub.s32 %s13, 2
      %s20 = sadd.s32 %s13, 1
      %s21 = ssub.s32 %s13, %s20
      %p22 = scmp.eq.s32.totalorder %s21, 0
      %s24 = sadd.s32 %s23, 1
      %s25 = scalar_select %p22, %s23, %s24
      %p28 = pneg %p22
      %p29 = scmp.eq.s32.totalorder %s13, 1
      %p30 = por %p28, %p29
      %p31 = scmp.ne.s32.totalorder %s23, %s26
      %p32 = scmp.eq.s32.totalorder %s13, 0
      %p33 = por %p31, %p32
      %p34 = scmp.ne.s32.totalorder %s23, %s26
      %p35 = scmp.eq.s32.totalorder %s18, 1
      %p36 = por %p34, %p35
      %p37 = scmp.ne.s32.totalorder %s26, %s27
      %p38 = scmp.eq.s32.totalorder %s18, 0
      %p39 = por %p37, %p38
      %p40 = scmp.ne.s32.totalorder %s26, %s27
      %p41 = scmp.eq.s32.totalorder %s19, 1
      %p42 = por %p40, %p41
      %p44 = scmp.ne.s32.totalorder %s27, %s43
      %p45 = scmp.eq.s32.totalorder %s19, 0
      %p46 = por %p44, %p45
      %s47 = ssub.s32 %s13, %s20
      %p48 = scmp.eq.s32.totalorder %s47, 0
      %s50 = sadd.s32 %s49, 1
      %s51 = scalar_select %p48, %s49, %s50
      %p54 = pneg %p48
      %p55 = scmp.eq.s32.totalorder %s13, 1
      %p56 = por %p54, %p55
      %p57 = scmp.ne.s32.totalorder %s49, %s52
      %p58 = scmp.eq.s32.totalorder %s13, 0
      %p59 = por %p57, %p58
      %p60 = scmp.ne.s32.totalorder %s49, %s52
      %p61 = scmp.eq.s32.totalorder %s18, 1
      %p62 = por %p60, %p61
      %p63 = scmp.ne.s32.totalorder %s52, %s53
      %p64 = scmp.eq.s32.totalorder %s18, 0
      %p65 = por %p63, %p64
      %p66 = scmp.ne.s32.totalorder %s52, %s53
      %p67 = scmp.eq.s32.totalorder %s19, 1
      %p68 = por %p66, %p67
      %p70 = scmp.ne.s32.totalorder %s53, %s69
      %p71 = scmp.eq.s32.totalorder %s19, 0
      %p72 = por %p70, %p71
      %p73 = scmp.le.s32.totalorder 1, %s13
      %p74 = scmp.lt.s32.totalorder %s13, 3
      %p75 = pnand %p73, %p74
      %p76 = pneg %p75
      // Predicated region
      $region9: #{tpu_custom_call.1} parent=5 // pred_check
        _
      $region10: #{tpu_custom_call.1} parent=5 // pred_check_branch
        %78 = sbr.rel (%p75) target = $region12
      $region11: #{tpu_custom_call.1} parent=5 // pred_region
        %s79 = ssub.s32 %s13, 1
      $region12: #{tpu_custom_call.1} parent=5 // pred_fallthru
        _
      %p80 = scmp.lt.s32.totalorder %s13, 2
      // Predicated region
      $region13: #{tpu_custom_call.1} parent=5 // pred_check
        %p81 = pneg %p80
      $region14: #{tpu_custom_call.1} parent=5 // pred_check_branch
        %83 = sbr.rel (%p81) target = $region16
      $region15: #{tpu_custom_call.1} parent=5 // pred_region
        // Predicated region
        $region17: #{tpu_custom_call.1} parent=15 // pred_check
          %p84 = pneg %p33
        $region18: #{tpu_custom_call.1} parent=15 // pred_check_branch
          %86 = sbr.rel (%p84) target = $region20
        $region19: #{tpu_custom_call.1} parent=15 // pred_region
          %s87 = sand.u32 %s23, 1
          %s88 = scalar_lea.sflag [#allocation3], %s87
          %s89 = sand.u32 %s23, 1
          %s90 = smul.addr %s89, 4
          %s91 = scalar_lea.vmem [#allocation2], %s90
          %s93 = ssub.s32 64, 64
          %94 = vsyncadd %s88, %s93
          %s95 = smul.addr %s13, 2
          %s96 = smul.addr %s95, 32
          %s97 = scalar_lea.hbm %s0, %s96
          %s98 = sshll.u32 %s91, 4
          %s99 = int_to_ptr.vmem [resolvable:$true] %s98
          %104 = dma.hbm_to_vmem [thread:$0]  %s97, 64, %s99, %s88, 32, 32, 2
        $region20: #{tpu_custom_call.1} parent=15 // pred_fallthru
          _
      $region16: #{tpu_custom_call.1} parent=5 // pred_fallthru
        _
      %p105 = scmp.le.s32.totalorder 1, %s13
      %p106 = scmp.lt.s32.totalorder %s13, 3
      %p107 = pnand %p105, %p106
      %p108 = pneg %p107
      // Predicated region
      $region21: #{tpu_custom_call.1} parent=5 // pred_check
        _
      $region22: #{tpu_custom_call.1} parent=5 // pred_check_branch
        %110 = sbr.rel (%p107) target = $region24
      $region23: #{tpu_custom_call.1} parent=5 // pred_region
        %s111 = ssub.s32 %s13, 1
        %s112 = sand.u32 %s26, 1
        %s113 = scalar_lea.sflag [#allocation3], %s112
        %s114 = sand.u32 %s26, 1
        %s115 = smul.addr %s114, 4
        %s116 = scalar_lea.vmem [#allocation2], %s115
        // Predicated region
        $region25: #{tpu_custom_call.1} parent=23 // pred_check
          %p117 = pneg %p39
        $region26: #{tpu_custom_call.1} parent=23 // pred_check_branch
          %119 = sbr.rel (%p117) target = $region28
        $region27: #{tpu_custom_call.1} parent=23 // pred_region
          %120 = dma.done %s113, 64
        $region28: #{tpu_custom_call.1} parent=23 // pred_fallthru
          _
        %s121 = sand.u32 %s26, 1
        %s122 = scalar_lea.sflag [#allocation3], %s121
        %s123 = sand.u32 %s26, 1
        %s124 = smul.addr %s123, 4
        %s125 = scalar_lea.vmem [#allocation2], %s124
        %p126 = pneg %p39
        %p127 = pneg %p36
        %p128 = pneg %p65
        %p129 = pneg %p62
        %s130 = sand.u32 %s52, 1
        %s131 = scalar_lea.sflag [#allocation4], %s130
        %s132 = sand.u32 %s52, 1
        %s133 = smul.addr %s132, 8
        %s134 = scalar_lea.vmem [#allocation5], %s133
        %v137 = vlaneseq
        %v138 = vshrl.u32 %v137, 7
        %v139 = vadd.s32 %v138, 8
        %v140 = vlaneseq
        %v141 = vand.u32 %v140, 127
        %v142 = vmul.u32 %v138, 2
        %v143 = vmul.u32 %v139, 2
        %v144 = vsub.s32 %v141, %v142
        %v145 = vsub.s32 %v141, %v143
        %vm146 = vcmp.lt.s32.totalorder %v144, 0
        %v147 = vsub.s32 0, %v144
        %v148 = vsel %vm146, %v147, %v144
        %vm149 = vcmp.lt.s32.totalorder %v145, 0
        %v150 = vsub.s32 0, %v145
        %v151 = vsel %vm149, %v150, %v145
        %vm152 = vcmp.le.s32.totalorder %v148, 1
        %vm153 = vcmp.le.s32.totalorder %v151, 1
        %v154 = vsel %vm152, 1, 0
        %v155 = vsel %vm153, 1, 0
        %v156 = vcvt.s32.f32 %v154
        %v157 = vcvt.s32.f32 %v155
        %v158 = vadd.s32 %v138, 16
        %v159 = vadd.s32 %v138, 24
        %v160 = vmul.u32 %v141, 2
        %v161 = vsub.s32 %v138, %v160
        %v162 = vsub.s32 %v139, %v160
        %v163 = vsub.s32 %v158, %v160
        %v164 = vsub.s32 %v159, %v160
        %vm165 = vcmp.lt.s32.totalorder %v161, 0
        %v166 = vsub.s32 0, %v161
        %v167 = vsel %vm165, %v166, %v161
        %vm168 = vcmp.lt.s32.totalorder %v162, 0
        %v169 = vsub.s32 0, %v162
        %v170 = vsel %vm168, %v169, %v162
        %vm171 = vcmp.lt.s32.totalorder %v163, 0
        %v172 = vsub.s32 0, %v163
        %v173 = vsel %vm171, %v172, %v163
        %vm174 = vcmp.lt.s32.totalorder %v164, 0
        %v175 = vsub.s32 0, %v164
        %v176 = vsel %vm174, %v175, %v164
        %vm177 = vcmp.le.s32.totalorder %v167, 1
        %vm178 = vcmp.le.s32.totalorder %v170, 1
        %vm179 = vcmp.le.s32.totalorder %v173, 1
        %vm180 = vcmp.le.s32.totalorder %v176, 1
        %v181 = vsel %vm177, 1, 0
        %v182 = vsel %vm178, 1, 0
        %v183 = vsel %vm179, 1, 0
        %v184 = vsel %vm180, 1, 0
        %v185 = vcvt.s32.f32 %v181
        %v186 = vcvt.s32.f32 %v182
        %v187 = vcvt.s32.f32 %v183
        %v188 = vcvt.s32.f32 %v184
        %v189 = vld [vmem:[%s116] sm:$0x3]
        %v190 = vld [vmem:[%s116 + $0x2] sm:$0x3]
        %v191 = vunpack.c.0.s8 %v189
        %v192 = vunpack.c.0.s8 %v190
        %v193 = vcvt.s32.f32 %v191
        %v194 = vcvt.s32.f32 %v192
        %vm195 = vcmask 130048
        %v197 = vsel %vm195, %v193, 0
        %v200 = vsel %vm195, %v194, 0
        %202 = vmatprep.subr.mxu0 0.0
        %203 = vmatpush1.msra.mxu0 0.0
        %204 = vmatprep.subr.mxu0 0.0
        %205 = vmatpush1.msra.mxu0 0.0
        %206 = vmatprep.subr.mxu0 0.0
        %207 = vmatpush1.msra.mxu0 0.0
        %208 = vmatprep.subr.mxu0 0.0
        %209 = vmatpush1.msra.mxu0 0.0
        %210 = vmatprep.subr.mxu0 0.0
        %211 = vmatpush1.msra.mxu0 0.0
        %212 = vmatprep.subr.mxu0 0.0
        %213 = vmatpush1.msra.mxu0 0.0
        %214 = vmatprep.subr.mxu0 0.0
        %215 = vmatpush1.msra.mxu0 0.0
        %216 = vmatprep.subr.mxu0 0.0
        %217 = vmatpush1.msra.mxu0 0.0
        %218 = vmatprep.subr.mxu0 0.0
        %219 = vmatpush1.msra.mxu0 0.0
        %220 = vmatprep.subr.mxu0 0.0
        %221 = vmatpush1.msra.mxu0 0.0
        %222 = vmatprep.subr.mxu0 0.0
        %223 = vmatpush1.msra.mxu0 0.0
        %224 = vmatprep.subr.mxu0 0.0
        %225 = vmatpush1.msra.mxu0 0.0
        %226 = vmatprep.subr.mxu0 0.0
        %227 = vmatpush1.msra.mxu0 0.0
        %228 = vmatprep.subr.mxu0 0.0
        %229 = vmatpush1.msra.mxu0 0.0
        %230 = vmatprep.subr.mxu0 0.0
        %231 = vmatpush1.msra.mxu0 %v157
        %232 = vmatprep.subr.mxu0 0.0
        %233 = vmatpush1.msra.mxu0 %v156
        %234 = vmatprep.subr.mxu0 0.0
        %235 = vmatpush2.msra.mxu0 0.0
        %236 = vmatprep.subr.mxu0 0.0
        %237 = vmatpush2.msra.mxu0 0.0
        %238 = vmatprep.subr.mxu0 0.0
        %239 = vmatpush2.msra.mxu0 0.0
        %240 = vmatprep.subr.mxu0 0.0
        %241 = vmatpush2.msra.mxu0 0.0
        %242 = vmatprep.subr.mxu0 0.0
        %243 = vmatpush2.msra.mxu0 0.0
        %244 = vmatprep.subr.mxu0 0.0
        %245 = vmatpush2.msra.mxu0 0.0
        %246 = vmatprep.subr.mxu0 0.0
        %247 = vmatpush2.msra.mxu0 0.0
        %248 = vmatprep.subr.mxu0 0.0
        %249 = vmatpush2.msra.mxu0 0.0
        %250 = vmatprep.subr.mxu0 0.0
        %251 = vmatpush2.msra.mxu0 0.0
        %252 = vmatprep.subr.mxu0 0.0
        %253 = vmatpush2.msra.mxu0 0.0
        %254 = vmatprep.subr.mxu0 0.0
        %255 = vmatpush2.msra.mxu0 0.0
        %256 = vmatprep.subr.mxu0 0.0
        %257 = vmatpush2.msra.mxu0 0.0
        %258 = vmatprep.subr.mxu0 0.0
        %259 = vmatpush2.msra.mxu0 0.0
        %260 = vmatprep.subr.mxu0 0.0
        %261 = vmatpush2.msra.mxu0 0.0
        %262 = vmatprep.subr.mxu0 0.0
        %263 = vmatpush2.msra.mxu0 0.0
        %264 = vmatprep.subr.mxu0 0.0
        %265 = vmatpush2.msra.mxu0 0.0
        %266 = vmatprep.mubr.f32.mxu0 0.0
        %267 = vmatmul.mubr.f32.gmra.mxu0 %v197
        %v268 = vpop.f32.mrf.mxu0
        %v269 = vadd.f32 0.0, %v268
        %v270 = vpop.f32.mrf.mxu0
        %271 = vmatprep.mubr.f32.mxu0 0.0
        %272 = vmatmul.mubr.f32.gmra.mxu0 %v200
        %v273 = vpop.f32.mrf.mxu0
        %v274 = vadd.f32 0.0, %v273
        %v275 = vpop.f32.mrf.mxu0
        %276 = vdwg.mxu0
        %v278 = vsel %vm195, %v185, 0
        %v281 = vsel %vm195, %v186, 0
        %v284 = vsel %vm195, %v187, 0
        %v287 = vsel %vm195, %v188, 0
        %289 = vmatprep.subr.mxu0 0.0
        %290 = vmatpush1.msra.mxu0 0.0
        %291 = vmatprep.subr.mxu0 0.0
        %292 = vmatpush1.msra.mxu0 0.0
        %293 = vmatprep.subr.mxu0 0.0
        %294 = vmatpush1.msra.mxu0 0.0
        %295 = vmatprep.subr.mxu0 0.0
        %296 = vmatpush1.msra.mxu0 0.0
        %297 = vmatprep.subr.mxu0 0.0
        %298 = vmatpush1.msra.mxu0 0.0
        %299 = vmatprep.subr.mxu0 0.0
        %300 = vmatpush1.msra.mxu0 0.0
        %301 = vmatprep.subr.mxu0 0.0
        %302 = vmatpush1.msra.mxu0 0.0
        %303 = vmatprep.subr.mxu0 0.0
        %304 = vmatpush1.msra.mxu0 0.0
        %305 = vmatprep.subr.mxu0 0.0
        %306 = vmatpush1.msra.mxu0 0.0
        %307 = vmatprep.subr.mxu0 0.0
        %308 = vmatpush1.msra.mxu0 0.0
        %309 = vmatprep.subr.mxu0 0.0
        %310 = vmatpush1.msra.mxu0 0.0
        %311 = vmatprep.subr.mxu0 0.0
        %312 = vmatpush1.msra.mxu0 0.0
        %313 = vmatprep.subr.mxu0 0.0
        %314 = vmatpush1.msra.mxu0 0.0
        %315 = vmatprep.subr.mxu0 0.0
        %316 = vmatpush1.msra.mxu0 0.0
        %317 = vmatprep.subr.mxu0 0.0
        %318 = vmatpush1.msra.mxu0 %v274
        %319 = vmatprep.subr.mxu0 0.0
        %320 = vmatpush1.msra.mxu0 %v269
        %321 = vmatprep.subr.mxu0 0.0
        %322 = vmatpush2.msra.mxu0 0.0
        %323 = vmatprep.subr.mxu0 0.0
        %324 = vmatpush2.msra.mxu0 0.0
        %325 = vmatprep.subr.mxu0 0.0
        %326 = vmatpush2.msra.mxu0 0.0
        %327 = vmatprep.subr.mxu0 0.0
        %328 = vmatpush2.msra.mxu0 0.0
        %329 = vmatprep.subr.mxu0 0.0
        %330 = vmatpush2.msra.mxu0 0.0
        %331 = vmatprep.subr.mxu0 0.0
        %332 = vmatpush2.msra.mxu0 0.0
        %333 = vmatprep.subr.mxu0 0.0
        %334 = vmatpush2.msra.mxu0 0.0
        %335 = vmatprep.subr.mxu0 0.0
        %336 = vmatpush2.msra.mxu0 0.0
        %337 = vmatprep.subr.mxu0 0.0
        %338 = vmatpush2.msra.mxu0 0.0
        %339 = vmatprep.subr.mxu0 0.0
        %340 = vmatpush2.msra.mxu0 0.0
        %341 = vmatprep.subr.mxu0 0.0
        %342 = vmatpush2.msra.mxu0 0.0
        %343 = vmatprep.subr.mxu0 0.0
        %344 = vmatpush2.msra.mxu0 0.0
        %345 = vmatprep.subr.mxu0 0.0
        %346 = vmatpush2.msra.mxu0 0.0
        %347 = vmatprep.subr.mxu0 0.0
        %348 = vmatpush2.msra.mxu0 0.0
        %349 = vmatprep.subr.mxu0 0.0
        %350 = vmatpush2.msra.mxu0 0.0
        %351 = vmatprep.subr.mxu0 0.0
        %352 = vmatpush2.msra.mxu0 0.0
        %353 = vmatprep.mubr.f32.mxu0 0.0
        %354 = vmatmul.mubr.f32.gmra.mxu0 %v278
        %v355 = vpop.f32.mrf.mxu0
        %v356 = vadd.f32 0.0, %v355
        %v357 = vpop.f32.mrf.mxu0
        %358 = vmatprep.mubr.f32.mxu0 0.0
        %359 = vmatmul.mubr.f32.gmra.mxu0 %v281
        %v360 = vpop.f32.mrf.mxu0
        %v361 = vadd.f32 0.0, %v360
        %v362 = vpop.f32.mrf.mxu0
        %363 = vmatprep.mubr.f32.mxu0 0.0
        %364 = vmatmul.mubr.f32.gmra.mxu0 %v284
        %v365 = vpop.f32.mrf.mxu0
        %v366 = vadd.f32 0.0, %v365
        %v367 = vpop.f32.mrf.mxu0
        %368 = vmatprep.mubr.f32.mxu0 0.0
        %369 = vmatmul.mubr.f32.gmra.mxu0 %v287
        %v370 = vpop.f32.mrf.mxu0
        %v371 = vadd.f32 0.0, %v370
        %v372 = vpop.f32.mrf.mxu0
        %373 = vdwg.mxu0
        %vm374 = vcmp.gt.f32.partialorder %v356, 0.5
        %vm375 = vcmp.gt.f32.partialorder %v361, 0.5
        %vm376 = vcmp.gt.f32.partialorder %v366, 0.5
        %vm377 = vcmp.gt.f32.partialorder %v371, 0.5
        %vm378 = vmpackc.low %vm375, %vm374
        %vm379 = vmpackc.low %vm377, %vm376
        %vm380 = vmpackc.even %vm379, %vm378
        %v381 = vsel %vm380, 16843009, 0
        %vm382 = vcmask 261120
        %383 = vst.msk [vmem:[%s134] sm:$0xff] %vm382, %v381
        %s384 = sand.u32 %s52, 1
        %s385 = scalar_lea.sflag [#allocation4], %s384
        %s386 = sand.u32 %s52, 1
        %s387 = smul.addr %s386, 8
        %s388 = scalar_lea.vmem [#allocation5], %s387
        // Predicated region
        $region29: #{tpu_custom_call.1} parent=23 // pred_check
          %p389 = pneg %p62
        $region30: #{tpu_custom_call.1} parent=23 // pred_check_branch
          %391 = sbr.rel (%p389) target = $region32
        $region31: #{tpu_custom_call.1} parent=23 // pred_region
          %s393 = ssub.s32 128, 128
          %394 = vsyncadd %s385, %s393
          %s395 = smul.addr %s18, 128
          %s396 = scalar_lea.hbm %s1, %s395
          %s398 = sshll.u32 %s388, 4
          %s399 = int_to_ptr.vmem [resolvable:$true] %s398
          %401 = dma.vmem_to_hbm [thread:$0]  %s399, 128, %s396, %s385
        $region32: #{tpu_custom_call.1} parent=23 // pred_fallthru
          _
      $region24: #{tpu_custom_call.1} parent=5 // pred_fallthru
        _
      %p402 = scmp.le.s32.totalorder 2, %s13
      // Predicated region
      $region33: #{tpu_custom_call.1} parent=5 // pred_check
        %p403 = pneg %p402
      $region34: #{tpu_custom_call.1} parent=5 // pred_check_branch
        %405 = sbr.rel (%p403) target = $region36
      $region35: #{tpu_custom_call.1} parent=5 // pred_region
        %s406 = ssub.s32 %s13, 2
        // Predicated region
        $region37: #{tpu_custom_call.1} parent=35 // pred_check
          %p407 = pneg %p68
        $region38: #{tpu_custom_call.1} parent=35 // pred_check_branch
          %409 = sbr.rel (%p407) target = $region40
        $region39: #{tpu_custom_call.1} parent=35 // pred_region
          %s410 = sand.u32 %s53, 1
          %s411 = scalar_lea.sflag [#allocation4], %s410
          %s412 = sand.u32 %s53, 1
          %s413 = smul.addr %s412, 8
          %s414 = scalar_lea.vmem [#allocation5], %s413
          %415 = dma.done %s411, 128
        $region40: #{tpu_custom_call.1} parent=35 // pred_fallthru
          _
      $region36: #{tpu_custom_call.1} parent=5 // pred_fallthru
        _
    $region6: #{tpu_custom_call.1} parent=1 // loop_footer
      %s17 = sadd.s32 1, %s13
    $region7: #{tpu_custom_call.1} parent=1 // loop_footer_branch
      %12 = sbr.rel target = $region3
    $region8: #{tpu_custom_call.1} parent=1 // loop_exit
      _
    %416 = vsyncpa [#allocation3], 1
    %s417 = scalar_lea.sflag [#allocation3], 1
    %418 = vsyncpa %s417, 1
    %419 = vsyncpa [#allocation4], 1
    %s420 = scalar_lea.sflag [#allocation4], 1
    %421 = vsyncpa %s420, 1

</llo_original>
